<compile_context>
chip_gen: v5e
topology: v5e:2x2
jax: 0.10.0
libtpu: 0.0.40
codegen_flags: <defaults>
</compile_context>

<pallas_src>
import functools

import jax
import jax.numpy as jnp
from jax.experimental import pallas as pl
from jax.experimental.pallas import tpu as pltpu


def _round_up(x, m):
    return (x + m - 1) // m * m


def _nf_kernel(z_ref, w_ref, u_ref, wu_ref, g_ref, b_ref,
               z_out_ref, logj_ref, acts_ref, *, num_layers):
    f32 = jnp.float32
    l_pad, tb = acts_ref.shape

    # MXU: pre-activations of the *initial* z for every layer (batch on lanes).
    #   zw[l, :] = w_l . z0           -> (L_pad, TB)   (W @ z^T, NT form)
    zw = jax.lax.dot_general(
        w_ref[...], z_ref[...].astype(f32),
        dimension_numbers=(((1,), (1,)), ((), ())),
        preferred_element_type=f32)

    # Padded act rows must be well defined: they feed the masked logJ pass and
    # the final matmul (against zero rows of U).
    if l_pad > num_layers:
        acts_ref[pl.ds(num_layers, l_pad - num_layers), :] = jnp.zeros(
            (l_pad - num_layers, tb), f32)

    # Serial planar-flow recurrence on lane-dense (1, TB) rows:
    #   act_l = tanh(zw[l] + b_l + sum_{k<l} G[l,k] * act_k)
    # G and b live in SMEM -> per-layer scalar broadcasts are essentially free.
    # TODO(synk): switch the static unroll to lax.fori_loop over the acts
    # scratch if flow_length grows beyond ~16.
    corr = [jnp.zeros((1, tb), f32) for _ in range(num_layers)]
    for l in range(num_layers):
        pre = zw[l:l + 1, :] + b_ref[l] + corr[l]
        act = jnp.tanh(pre)
        acts_ref[pl.ds(l, 1), :] = act
        for m in range(l + 1, num_layers):        # strict lower triangle only
            corr[m] = corr[m] + g_ref[m, l] * act

    # Vectorized log-Jacobian over all layers at once (full sublane util, all
    # log/abs/mul off the serial chain).  Padded rows are masked out.
    a_all = acts_ref[...]                                   # (L_pad, TB)
    det = 1.0 + (1.0 - a_all * a_all) * wu_ref[...]         # wu: (L_pad, 1)
    row = jax.lax.broadcasted_iota(jnp.int32, (l_pad, 1), 0)
    terms = jnp.where(row < num_layers,
                      jnp.log(jnp.abs(det) + 1e-7), 0.0)
    logj_ref[...] = jnp.sum(terms, axis=0, keepdims=True).astype(logj_ref.dtype)

    # z_out = z0 + A^T @ U   (TN form; re-read the tile instead of keeping it
    # live across the whole unrolled layer chain).
    delta = jax.lax.dot_general(
        a_all, u_ref[...],
        dimension_numbers=(((0,), (0,)), ((), ())),
        preferred_element_type=f32)                         # (TB, D)
    z_out_ref[...] = (z_ref[...].astype(f32) + delta).astype(z_out_ref.dtype)


def _pick_tile(batch, d, tile_b):
    """Pick (tile_b, padded_b).

    Targets ~2 MiB of streamed data per grid step (amortizes the ~0.35us
    per-step overhead), caps the double-buffered in+out VMEM footprint at
    ~24 MiB (safe on v7x's 64 MiB physical VMEM and v5e's small scoped
    default), prefers >=2 grid steps (v7x megacore sharding of the batch
    axis), and limits batch-padding waste to <=25%.
    """
    pb0 = _round_up(max(batch, 128), 128)
    vmem_row_bytes = 4 * 4 * max(d, 128)        # in + out, double-buffered
    cap = max(128, ((24 << 20) // vmem_row_bytes) // 128 * 128)
    if tile_b is None:
        t = (2 << 20) // (4 * max(d, 1))
        t = max(512, min(8192, t))
        t = min(_round_up(t, 128), cap, pb0)
        # v7x megacore: prefer >= 2 grid steps when the batch allows it.
        if pb0 >= 256 and pb0 // t < 2:
            t = max(128, (pb0 // 2) // 128 * 128)
        # Limit batch-padding waste.
        while t > 128 and _round_up(pb0, t) - pb0 > pb0 // 4:
            t -= 128
    else:
        t = min(_round_up(max(tile_b, 128), 128), cap, pb0)
    return t, _round_up(pb0, t)


def normalizing_flow(z, w, b, u, *, tile_b=None):
    """z: (B, D); w, u: (L, D); b: (L, 1). Returns (z_out (B, D), logJ (B, 1))."""
    B, D = z.shape
    L = w.shape[0]
    L_pad = _round_up(L, 8)
    f32 = jnp.float32

    tile_b, padded_b = _pick_tile(B, D, tile_b)
    grid = (padded_b // tile_b,)

    z32 = z.astype(f32)
    if padded_b != B:                       # only pad when batch is misaligned
        z32 = jnp.pad(z32, ((0, padded_b - B), (0, 0)))

    w32 = w.astype(f32)
    u32 = u.astype(f32)
    w_pad = jnp.zeros((L_pad, D), f32).at[:L].set(w32)
    u_pad = jnp.zeros((L_pad, D), f32).at[:L].set(u32)
    # Grid-invariant layer interactions, precomputed once by XLA:
    #   G[m, k] = w_m . u_k  (SMEM scalars),  diag(G) as a VMEM column.
    g = jnp.dot(w32, u32.T)                                       # (L, L)
    wu_col = jnp.zeros((L_pad, 1), f32).at[:L, 0].set(jnp.sum(w32 * u32, -1))
    b_flat = b.astype(f32).reshape(L)

    kernel = functools.partial(_nf_kernel, num_layers=L)
    z_out, logj_row = pl.pallas_call(
        kernel,
        out_shape=(jax.ShapeDtypeStruct((padded_b, D), f32),
                   jax.ShapeDtypeStruct((1, padded_b), f32)),
        grid_spec=pltpu.PrefetchScalarGridSpec(
            num_scalar_prefetch=0,
            grid=grid,
            in_specs=[
                pl.BlockSpec((tile_b, D), lambda i: (i, 0)),         # z tile
                pl.BlockSpec((L_pad, D), lambda i: (0, 0)),          # W
                pl.BlockSpec((L_pad, D), lambda i: (0, 0)),          # U
                pl.BlockSpec((L_pad, 1), lambda i: (0, 0)),          # diag(G)
                pl.BlockSpec(memory_space=pltpu.MemorySpace.SMEM),   # G
                pl.BlockSpec(memory_space=pltpu.MemorySpace.SMEM),   # b
            ],
            out_specs=(
                pl.BlockSpec((tile_b, D), lambda i: (i, 0)),         # z_out
                pl.BlockSpec((1, tile_b), lambda i: (0, i)),         # logJ row
            ),
            scratch_shapes=[pltpu.VMEM((L_pad, tile_b), f32)],       # acts
        ),
        compiler_params=pltpu.CompilerParams(
            dimension_semantics=("parallel",),
            vmem_limit_bytes=64 << 20),
    )(z32, w_pad, u_pad, wu_col, g, b_flat)

    z_final = z_out if padded_b == B else z_out[:B]
    logj = logj_row[:, :B].T                              # (B, 1)
    return z_final, logj


def normalizing_flow_ref(z, w, b, u):
    """Pure-JAX layer-by-layer reference of the same chain."""
    z = z.astype(jnp.float32)
    logj = jnp.zeros((z.shape[0], 1), jnp.float32)
    for l in range(w.shape[0]):
        w_row = w[l:l + 1, :]
        u_row = u[l:l + 1, :]
        pre = jnp.sum(z * w_row, axis=-1, keepdims=True) + b[l:l + 1, :]
        act = jnp.tanh(pre)
        z = z + u_row * act
        det = 1.0 + (1.0 - act * act) * jnp.sum(w_row * u_row)
        logj = logj + jnp.log(jnp.abs(det) + 1e-7)
    return z, logj


if __name__ == "__main__":
    B, D, L = 8, 32, 4   # batch, latent dim, flow_length

    key = jax.random.PRNGKey(0)
    kz, kw, kb, ku = jax.random.split(key, 4)
    z = jax.random.normal(kz, (B, D), dtype=jnp.float32)
    w = 0.1 * jax.random.normal(kw, (L, D), dtype=jnp.float32)
    b = 0.1 * jax.random.normal(kb, (L, 1), dtype=jnp.float32)
    u = 0.1 * jax.random.normal(ku, (L, D), dtype=jnp.float32)

    z_out, logj = jax.block_until_ready(normalizing_flow(z, w, b, u))
    z_ref, logj_ref = normalizing_flow_ref(z, w, b, u)
    assert z_out.shape == (B, D) and logj.shape == (B, 1)
    # MXU matmuls change the fp32 summation order vs. the elementwise
    # reference -> slightly looser tolerance.
    assert jnp.allclose(z_out, z_ref, atol=1e-4, rtol=1e-4)
    assert jnp.allclose(logj, logj_ref, atol=1e-4, rtol=1e-4)

    # Multi-tile grid path (auto tile split + batch padding).
    B2 = 260
    z2 = jax.random.normal(jax.random.PRNGKey(1), (B2, D), dtype=jnp.float32)
    z2_out, logj2 = jax.block_until_ready(normalizing_flow(z2, w, b, u))
    z2_ref, logj2_ref = normalizing_flow_ref(z2, w, b, u)
    assert jnp.allclose(z2_out, z2_ref, atol=1e-4, rtol=1e-4)
    assert jnp.allclose(logj2, logj2_ref, atol=1e-4, rtol=1e-4)

    # Explicit tile-size override path.
    z3_out, logj3 = jax.block_until_ready(
        normalizing_flow(z2, w, b, u, tile_b=128))
    assert jnp.allclose(z3_out, z2_ref, atol=1e-4, rtol=1e-4)
    assert jnp.allclose(logj3, logj2_ref, atol=1e-4, rtol=1e-4)

    print("KERNEL_OK")
</pallas_src>

<mosaic_0001>
module attributes {stable_mosaic.version = 11 : i64} {
  func.func @_nf_kernel(%arg0: i32, %arg1: memref<128x32xf32, #tpu.memory_space<vmem>>, %arg2: memref<8x32xf32, #tpu.memory_space<vmem>>, %arg3: memref<8x32xf32, #tpu.memory_space<vmem>>, %arg4: memref<8x1xf32, #tpu.memory_space<vmem>>, %arg5: memref<4x4xf32, #tpu.memory_space<smem>>, %arg6: memref<4xf32, #tpu.memory_space<smem>>, %arg7: memref<128x32xf32, #tpu.memory_space<vmem>>, %arg8: memref<1x128xf32, #tpu.memory_space<vmem>>, %arg9: memref<8x128xf32, #tpu.memory_space<vmem>>) attributes {dimension_semantics = [#tpu.dimension_semantics<parallel>], iteration_bounds = array<i64: 1>, scalar_prefetch = 0 : i64, scratch_operands = 1 : i64, tpu.core_type = #tpu.core_type<tc>, window_params = [{transform_indices = @transform_0, window_bounds = array<i64: 128, 32>}, {pipeline_mode = #tpu.pipeline_mode<synchronous>, transform_indices = @transform_1, window_bounds = array<i64: 8, 32>}, {pipeline_mode = #tpu.pipeline_mode<synchronous>, transform_indices = @transform_2, window_bounds = array<i64: 8, 32>}, {pipeline_mode = #tpu.pipeline_mode<synchronous>, transform_indices = @transform_3, window_bounds = array<i64: 8, 1>}, {transform_indices = @transform_4, window_bounds = array<i64: 4, 4>}, {transform_indices = @transform_5, window_bounds = array<i64: 4>}, {transform_indices = @transform_6, window_bounds = array<i64: 128, 32>}, {transform_indices = @transform_7, window_bounds = array<i64: 1, 128>}]} {
    %c0 = arith.constant 0 : index
    %c0_0 = arith.constant 0 : index
    %0 = vector.load %arg2[%c0, %c0_0] : memref<8x32xf32, #tpu.memory_space<vmem>>, vector<8x32xf32>
    %c0_1 = arith.constant 0 : index
    %c0_2 = arith.constant 0 : index
    %1 = vector.load %arg1[%c0_1, %c0_2] : memref<128x32xf32, #tpu.memory_space<vmem>>, vector<128x32xf32>
    %cst = arith.constant dense<0.000000e+00> : vector<8x128xf32>
    %2 = tpu.matmul %0, %1, %cst {dimension_numbers = #tpu.dot_dimension_numbers<[1], [1], [0], [0], [0, 0, 1, 0], [], []>} : vector<8x32xf32>, vector<128x32xf32>, vector<8x128xf32> -> vector<8x128xf32>
    %cst_3 = arith.constant 0.000000e+00 : f32
    %3 = vector.broadcast %cst_3 : f32 to vector<4x128xf32>
    %c4 = arith.constant 4 : index
    %c0_4 = arith.constant 0 : index
    %4 = vector.load %arg9[%c4, %c0_4] : memref<8x128xf32, #tpu.memory_space<vmem>>, vector<4x128xf32>
    tpu.vector_store %arg9[%c4, %c0_4], %3 {strides = array<i32>} : memref<8x128xf32, #tpu.memory_space<vmem>>, vector<4x128xf32>,
    %cst_5 = arith.constant 0.000000e+00 : f32
    %5 = vector.broadcast %cst_5 : f32 to vector<1x128xf32>
    %cst_6 = arith.constant 0.000000e+00 : f32
    %6 = vector.broadcast %cst_6 : f32 to vector<1x128xf32>
    %cst_7 = arith.constant 0.000000e+00 : f32
    %7 = vector.broadcast %cst_7 : f32 to vector<1x128xf32>
    %cst_8 = arith.constant 0.000000e+00 : f32
    %8 = vector.broadcast %cst_8 : f32 to vector<1x128xf32>
    %9 = vector.extract_strided_slice %2 {offsets = [0, 0], sizes = [1, 128], strides = [1, 1]} : vector<8x128xf32> to vector<1x128xf32>
    %c0_9 = arith.constant 0 : index
    %10 = memref.load %arg6[%c0_9] : memref<4xf32, #tpu.memory_space<smem>>
    %11 = vector.broadcast %10 : f32 to vector<1x128xf32>
    %12 = arith.addf %9, %11 : vector<1x128xf32>
    %13 = arith.addf %12, %5 : vector<1x128xf32>
    %14 = math.tanh %13 : vector<1x128xf32>
    %c0_10 = arith.constant 0 : index
    %c0_11 = arith.constant 0 : index
    %15 = vector.load %arg9[%c0_10, %c0_11] : memref<8x128xf32, #tpu.memory_space<vmem>>, vector<1x128xf32>
    tpu.vector_store %arg9[%c0_10, %c0_11], %14 {strides = array<i32>} : memref<8x128xf32, #tpu.memory_space<vmem>>, vector<1x128xf32>,
    %c1 = arith.constant 1 : index
    %c0_12 = arith.constant 0 : index
    %16 = memref.load %arg5[%c1, %c0_12] : memref<4x4xf32, #tpu.memory_space<smem>>
    %17 = vector.broadcast %16 : f32 to vector<1x128xf32>
    %18 = arith.mulf %17, %14 : vector<1x128xf32>
    %19 = arith.addf %6, %18 : vector<1x128xf32>
    %c2 = arith.constant 2 : index
    %c0_13 = arith.constant 0 : index
    %20 = memref.load %arg5[%c2, %c0_13] : memref<4x4xf32, #tpu.memory_space<smem>>
    %21 = vector.broadcast %20 : f32 to vector<1x128xf32>
    %22 = arith.mulf %21, %14 : vector<1x128xf32>
    %23 = arith.addf %7, %22 : vector<1x128xf32>
    %c3 = arith.constant 3 : index
    %c0_14 = arith.constant 0 : index
    %24 = memref.load %arg5[%c3, %c0_14] : memref<4x4xf32, #tpu.memory_space<smem>>
    %25 = vector.broadcast %24 : f32 to vector<1x128xf32>
    %26 = arith.mulf %25, %14 : vector<1x128xf32>
    %27 = arith.addf %8, %26 : vector<1x128xf32>
    %28 = vector.extract_strided_slice %2 {offsets = [1, 0], sizes = [1, 128], strides = [1, 1]} : vector<8x128xf32> to vector<1x128xf32>
    %c1_15 = arith.constant 1 : index
    %29 = memref.load %arg6[%c1_15] : memref<4xf32, #tpu.memory_space<smem>>
    %30 = vector.broadcast %29 : f32 to vector<1x128xf32>
    %31 = arith.addf %28, %30 : vector<1x128xf32>
    %32 = arith.addf %31, %19 : vector<1x128xf32>
    %33 = math.tanh %32 : vector<1x128xf32>
    %c1_16 = arith.constant 1 : index
    %c0_17 = arith.constant 0 : index
    %34 = vector.load %arg9[%c1_16, %c0_17] : memref<8x128xf32, #tpu.memory_space<vmem>>, vector<1x128xf32>
    tpu.vector_store %arg9[%c1_16, %c0_17], %33 {strides = array<i32>} : memref<8x128xf32, #tpu.memory_space<vmem>>, vector<1x128xf32>,
    %c2_18 = arith.constant 2 : index
    %c1_19 = arith.constant 1 : index
    %35 = memref.load %arg5[%c2_18, %c1_19] : memref<4x4xf32, #tpu.memory_space<smem>>
    %36 = vector.broadcast %35 : f32 to vector<1x128xf32>
    %37 = arith.mulf %36, %33 : vector<1x128xf32>
    %38 = arith.addf %23, %37 : vector<1x128xf32>
    %c3_20 = arith.constant 3 : index
    %c1_21 = arith.constant 1 : index
    %39 = memref.load %arg5[%c3_20, %c1_21] : memref<4x4xf32, #tpu.memory_space<smem>>
    %40 = vector.broadcast %39 : f32 to vector<1x128xf32>
    %41 = arith.mulf %40, %33 : vector<1x128xf32>
    %42 = arith.addf %27, %41 : vector<1x128xf32>
    %43 = vector.extract_strided_slice %2 {offsets = [2, 0], sizes = [1, 128], strides = [1, 1]} : vector<8x128xf32> to vector<1x128xf32>
    %c2_22 = arith.constant 2 : index
    %44 = memref.load %arg6[%c2_22] : memref<4xf32, #tpu.memory_space<smem>>
    %45 = vector.broadcast %44 : f32 to vector<1x128xf32>
    %46 = arith.addf %43, %45 : vector<1x128xf32>
    %47 = arith.addf %46, %38 : vector<1x128xf32>
    %48 = math.tanh %47 : vector<1x128xf32>
    %c2_23 = arith.constant 2 : index
    %c0_24 = arith.constant 0 : index
    %49 = vector.load %arg9[%c2_23, %c0_24] : memref<8x128xf32, #tpu.memory_space<vmem>>, vector<1x128xf32>
    tpu.vector_store %arg9[%c2_23, %c0_24], %48 {strides = array<i32>} : memref<8x128xf32, #tpu.memory_space<vmem>>, vector<1x128xf32>,
    %c3_25 = arith.constant 3 : index
    %c2_26 = arith.constant 2 : index
    %50 = memref.load %arg5[%c3_25, %c2_26] : memref<4x4xf32, #tpu.memory_space<smem>>
    %51 = vector.broadcast %50 : f32 to vector<1x128xf32>
    %52 = arith.mulf %51, %48 : vector<1x128xf32>
    %53 = arith.addf %42, %52 : vector<1x128xf32>
    %54 = vector.extract_strided_slice %2 {offsets = [3, 0], sizes = [1, 128], strides = [1, 1]} : vector<8x128xf32> to vector<1x128xf32>
    %c3_27 = arith.constant 3 : index
    %55 = memref.load %arg6[%c3_27] : memref<4xf32, #tpu.memory_space<smem>>
    %56 = vector.broadcast %55 : f32 to vector<1x128xf32>
    %57 = arith.addf %54, %56 : vector<1x128xf32>
    %58 = arith.addf %57, %53 : vector<1x128xf32>
    %59 = math.tanh %58 : vector<1x128xf32>
    %c3_28 = arith.constant 3 : index
    %c0_29 = arith.constant 0 : index
    %60 = vector.load %arg9[%c3_28, %c0_29] : memref<8x128xf32, #tpu.memory_space<vmem>>, vector<1x128xf32>
    tpu.vector_store %arg9[%c3_28, %c0_29], %59 {strides = array<i32>} : memref<8x128xf32, #tpu.memory_space<vmem>>, vector<1x128xf32>,
    %c0_30 = arith.constant 0 : index
    %c0_31 = arith.constant 0 : index
    %61 = vector.load %arg9[%c0_30, %c0_31] : memref<8x128xf32, #tpu.memory_space<vmem>>, vector<8x128xf32>
    %62 = arith.mulf %61, %61 : vector<8x128xf32>
    %cst_32 = arith.constant 1.000000e+00 : f32
    %63 = vector.broadcast %cst_32 : f32 to vector<8x128xf32>
    %64 = arith.subf %63, %62 : vector<8x128xf32>
    %c0_33 = arith.constant 0 : index
    %c0_34 = arith.constant 0 : index
    %65 = vector.load %arg4[%c0_33, %c0_34] : memref<8x1xf32, #tpu.memory_space<vmem>>, vector<8x1xf32>
    %66 = vector.broadcast %65 : vector<8x1xf32> to vector<8x128xf32>
    %67 = arith.mulf %64, %66 : vector<8x128xf32>
    %cst_35 = arith.constant 1.000000e+00 : f32
    %68 = vector.broadcast %cst_35 : f32 to vector<8x128xf32>
    %69 = arith.addf %68, %67 : vector<8x128xf32>
    %70 = tpu.iota {dimensions = array<i32: 0>} : vector<8x1xi32>
    %c4_i32 = arith.constant 4 : i32
    %71 = vector.broadcast %c4_i32 : i32 to vector<8x1xi32>
    %72 = arith.cmpi slt, %70, %71 : vector<8x1xi32>
    %73 = math.absf %69 : vector<8x128xf32>
    %cst_36 = arith.constant 1.000000e-07 : f32
    %74 = vector.broadcast %cst_36 : f32 to vector<8x128xf32>
    %75 = arith.addf %73, %74 : vector<8x128xf32>
    %76 = math.log %75 : vector<8x128xf32>
    %cst_37 = arith.constant 0.000000e+00 : f32
    %77 = vector.shape_cast %72 : vector<8x1xi1> to vector<8x1xi1>
    %78 = vector.broadcast %77 : vector<8x1xi1> to vector<8x128xi1>
    %79 = vector.broadcast %cst_37 : f32 to vector<8x128xf32>
    %80 = arith.select %78, %76, %79 : vector<8x128xi1>, vector<8x128xf32>
    %cst_38 = arith.constant dense<0.000000e+00> : vector<128xf32>
    %81 = vector.multi_reduction <add>, %80, %cst_38 [0] : vector<8x128xf32> to vector<128xf32>
    %82 = vector.shape_cast %81 : vector<128xf32> to vector<1x128xf32>
    %c0_39 = arith.constant 0 : index
    %c0_40 = arith.constant 0 : index
    %83 = vector.load %arg8[%c0_39, %c0_40] : memref<1x128xf32, #tpu.memory_space<vmem>>, vector<1x128xf32>
    tpu.vector_store %arg8[%c0_39, %c0_40], %82 {strides = array<i32>} : memref<1x128xf32, #tpu.memory_space<vmem>>, vector<1x128xf32>,
    %c0_41 = arith.constant 0 : index
    %c0_42 = arith.constant 0 : index
    %84 = vector.load %arg3[%c0_41, %c0_42] : memref<8x32xf32, #tpu.memory_space<vmem>>, vector<8x32xf32>
    %cst_43 = arith.constant dense<0.000000e+00> : vector<128x32xf32>
    %85 = tpu.matmul %61, %84, %cst_43 {dimension_numbers = #tpu.dot_dimension_numbers<[0], [0], [1], [1], [0, 1, 1, 1], [], []>} : vector<8x128xf32>, vector<8x32xf32>, vector<128x32xf32> -> vector<128x32xf32>
    %c0_44 = arith.constant 0 : index
    %c0_45 = arith.constant 0 : index
    %86 = vector.load %arg1[%c0_44, %c0_45] : memref<128x32xf32, #tpu.memory_space<vmem>>, vector<128x32xf32>
    %87 = arith.addf %86, %85 : vector<128x32xf32>
    %c0_46 = arith.constant 0 : index
    %c0_47 = arith.constant 0 : index
    %88 = vector.load %arg7[%c0_46, %c0_47] : memref<128x32xf32, #tpu.memory_space<vmem>>, vector<128x32xf32>
    tpu.vector_store %arg7[%c0_46, %c0_47], %87 {strides = array<i32>} : memref<128x32xf32, #tpu.memory_space<vmem>>, vector<128x32xf32>,
    return
  }
  func.func @transform_0(%arg0: i32) -> (i32, i32) {
    %c0_i32 = arith.constant 0 : i32
    %c0_i32_0 = arith.constant 0 : i32
    return %arg0, %c0_i32 : i32, i32
  }
  func.func @transform_1(%arg0: i32) -> (i32, i32) {
    %c0_i32 = arith.constant 0 : i32
    %c0_i32_0 = arith.constant 0 : i32
    %c0_i32_1 = arith.constant 0 : i32
    return %c0_i32, %c0_i32_0 : i32, i32
  }
  func.func @transform_2(%arg0: i32) -> (i32, i32) {
    %c0_i32 = arith.constant 0 : i32
    %c0_i32_0 = arith.constant 0 : i32
    %c0_i32_1 = arith.constant 0 : i32
    return %c0_i32, %c0_i32_0 : i32, i32
  }
  func.func @transform_3(%arg0: i32) -> (i32, i32) {
    %c0_i32 = arith.constant 0 : i32
    %c0_i32_0 = arith.constant 0 : i32
    %c0_i32_1 = arith.constant 0 : i32
    return %c0_i32, %c0_i32_0 : i32, i32
  }
  func.func @transform_4(%arg0: i32) -> (i32, i32) {
    %c0_i32 = arith.constant 0 : i32
    %c0_i32_0 = arith.constant 0 : i32
    %c0_i32_1 = arith.constant 0 : i32
    return %c0_i32, %c0_i32_0 : i32, i32
  }
  func.func @transform_5(%arg0: i32) -> i32 {
    %c0_i32 = arith.constant 0 : i32
    %c0_i32_0 = arith.constant 0 : i32
    return %c0_i32 : i32
  }
  func.func @transform_6(%arg0: i32) -> (i32, i32) {
    %c0_i32 = arith.constant 0 : i32
    %c0_i32_0 = arith.constant 0 : i32
    return %arg0, %c0_i32 : i32, i32
  }
  func.func @transform_7(%arg0: i32) -> (i32, i32) {
    %c0_i32 = arith.constant 0 : i32
    %c0_i32_0 = arith.constant 0 : i32
    return %c0_i32, %arg0 : i32, i32
  }
}

</mosaic_0001>

<llo_original>
// kernel: tpu_custom_call.1
$region0: #{tpu_custom_call.1}
  #allocation0 [shape = 'u32[]', space=smem, size = 0x4, offset = 0x4, fixed_abs, tag = 'smem constant byte address 0x4 - core index']
  #allocation1 [shape = 'u32[72,128]{1,0:T(1,128)}', space=vmem, size = 0x9000, scoped, tag = 'internal scratch']
  #allocation2 [shape = 'f32[8,128]{1,0:T(8,128)}', space=vmem, size = 0x1000, scoped, tag = 'scratch operand']
  %s0 = inlined_call_operand.vmem [shape: f32[128,32], index: 0, kind: input, shape index: {}]
  %s1 = inlined_call_operand.vmem [shape: f32[8,32], index: 1, kind: input, shape index: {}]
  %s2 = inlined_call_operand.vmem [shape: f32[8,32], index: 2, kind: input, shape index: {}]
  %s3 = inlined_call_operand.vmem [shape: f32[8,1], index: 3, kind: input, shape index: {}]
  %s4 = inlined_call_operand.vmem [shape: f32[4,4], index: 4, kind: input, shape index: {}]
  %s5 = inlined_call_operand.vmem [shape: f32[4], index: 5, kind: input, shape index: {}]
  %s6 = inlined_call_operand.vmem [shape: f32[128,32], index: 6, kind: output, shape index: {0}]
  %s7 = inlined_call_operand.hbm [shape: f32[1,128], index: 7, kind: output, shape index: {1}]
  %8 = xla_tuple %s6, %s7
  %s9 = sld [smem:[#allocation0]]
  $region50: #{tpu_custom_call.1} parent=0
    _
  %s11 = ssub.s32 1, %s9
  %s12 = scalar_select 0, %s11, %s9
  $region1: #{tpu_custom_call.1} parent=0
    #allocation3 [shape = 'u8[2048]{0}', space=smem, size = 0x800, scoped, tag = 'input window, operand 4, single buffered']
    #allocation4 [shape = 's32[1]{0}', space=sflag, size = 0x4, scoped, tag = 'scoped memory for tpu_custom_call.1']
    #allocation5 [shape = 's32[1]{0}', space=sflag, size = 0x4, scoped, tag = 'scoped memory for tpu_custom_call.1']
    #allocation6 [shape = 'u8[512]{0}', space=smem, size = 0x200, scoped, tag = 'input window, operand 5, single buffered']
    #allocation7 [shape = 's32[1]{0}', space=sflag, size = 0x4, scoped, tag = 'scoped memory for tpu_custom_call.1']
    #allocation8 [shape = 'u8[512]{0}', space=vmem, size = 0x400, scoped, tag = 'output window, operand 1, single buffered']
    %13 = vsyncpa [#allocation5], 0
    %14 = vsyncpa [#allocation7], 0
    %15 = vsyncpa [#allocation4], 0
    // Predicated region
    $region2: #{tpu_custom_call.1} parent=1 // pred_check
      _
    $region3: #{tpu_custom_call.1} parent=1 // pred_check_branch
      %17 = sbr.rel (0) target = $region5
    $region4: #{tpu_custom_call.1} parent=1 // pred_region
      _
    $region5: #{tpu_custom_call.1} parent=1 // pred_fallthru
      _
    // Predicated region
    $region6: #{tpu_custom_call.1} parent=1 // pred_check
      _
    $region7: #{tpu_custom_call.1} parent=1 // pred_check_branch
      %19 = sbr.rel (0) target = $region9
    $region8: #{tpu_custom_call.1} parent=1 // pred_region
      _
    $region9: #{tpu_custom_call.1} parent=1 // pred_fallthru
      _
    // Predicated region
    $region10: #{tpu_custom_call.1} parent=1 // pred_check
      _
    $region11: #{tpu_custom_call.1} parent=1 // pred_check_branch
      %21 = sbr.rel (0) target = $region13
    $region12: #{tpu_custom_call.1} parent=1 // pred_region
      _
    $region13: #{tpu_custom_call.1} parent=1 // pred_fallthru
      _
    // Predicated region
    $region14: #{tpu_custom_call.1} parent=1 // pred_check
      _
    $region15: #{tpu_custom_call.1} parent=1 // pred_check_branch
      %23 = sbr.rel (0) target = $region17
    $region16: #{tpu_custom_call.1} parent=1 // pred_region
      _
    $region17: #{tpu_custom_call.1} parent=1 // pred_fallthru
      _
    // Predicated region
    $region18: #{tpu_custom_call.1} parent=1 // pred_check
      _
    $region19: #{tpu_custom_call.1} parent=1 // pred_check_branch
      %25 = sbr.rel (0) target = $region21
    $region20: #{tpu_custom_call.1} parent=1 // pred_region
      %27 = vsyncadd [#allocation5], 0
      %s29 = sshll.u32 %s4, 4
      %s30 = int_to_ptr.vmem [resolvable:$true] %s29
      %32 = dma.vmem_to_smem %s30, 64, [#allocation3], [#allocation5]
    $region21: #{tpu_custom_call.1} parent=1 // pred_fallthru
      _
    // Predicated region
    $region22: #{tpu_custom_call.1} parent=1 // pred_check
      _
    $region23: #{tpu_custom_call.1} parent=1 // pred_check_branch
      %34 = sbr.rel (0) target = $region25
    $region24: #{tpu_custom_call.1} parent=1 // pred_region
      %36 = vsyncadd [#allocation7], 0
      %s38 = sshll.u32 %s5, 4
      %s39 = int_to_ptr.vmem [resolvable:$true] %s38
      %41 = dma.vmem_to_smem %s39, 16, [#allocation6], [#allocation7]
    $region25: #{tpu_custom_call.1} parent=1 // pred_fallthru
      _
    // Predicated region
    $region26: #{tpu_custom_call.1} parent=1 // pred_check
      _
    $region27: #{tpu_custom_call.1} parent=1 // pred_check_branch
      %43 = sbr.rel (0) target = $region29
    $region28: #{tpu_custom_call.1} parent=1 // pred_region
      %45 = dma.done [#allocation5], 64
    $region29: #{tpu_custom_call.1} parent=1 // pred_fallthru
      _
    // Predicated region
    $region30: #{tpu_custom_call.1} parent=1 // pred_check
      _
    $region31: #{tpu_custom_call.1} parent=1 // pred_check_branch
      %47 = sbr.rel (0) target = $region33
    $region32: #{tpu_custom_call.1} parent=1 // pred_region
      %49 = dma.done [#allocation7], 16
    $region33: #{tpu_custom_call.1} parent=1 // pred_fallthru
      _
    %50 = sfence
    %v51 = vld [vmem:[%s1] sm:$0xff]
    %v52 = vld [vmem:[%s0] sm:$0xff]
    %v53 = vld [vmem:[%s0 + $0x8] sm:$0xff]
    %v54 = vld [vmem:[%s0 + $0x10] sm:$0xff]
    %v55 = vld [vmem:[%s0 + $0x18] sm:$0xff]
    %v56 = vld [vmem:[%s0 + $0x20] sm:$0xff]
    %v57 = vld [vmem:[%s0 + $0x28] sm:$0xff]
    %v58 = vld [vmem:[%s0 + $0x30] sm:$0xff]
    %v59 = vld [vmem:[%s0 + $0x38] sm:$0xff]
    %v60 = vld [vmem:[%s0 + $0x40] sm:$0xff]
    %v61 = vld [vmem:[%s0 + $0x48] sm:$0xff]
    %v62 = vld [vmem:[%s0 + $0x50] sm:$0xff]
    %v63 = vld [vmem:[%s0 + $0x58] sm:$0xff]
    %v64 = vld [vmem:[%s0 + $0x60] sm:$0xff]
    %v65 = vld [vmem:[%s0 + $0x68] sm:$0xff]
    %v66 = vld [vmem:[%s0 + $0x70] sm:$0xff]
    %v67 = vld [vmem:[%s0 + $0x78] sm:$0xff]
    %vm68 = vcmask 261120
    %v70 = vsel %vm68, %v51, 0
    %v73 = vsel %vm68, %v52, 0
    %v76 = vsel %vm68, %v53, 0
    %v79 = vsel %vm68, %v54, 0
    %v82 = vsel %vm68, %v55, 0
    %v85 = vsel %vm68, %v56, 0
    %v88 = vsel %vm68, %v57, 0
    %v91 = vsel %vm68, %v58, 0
    %v94 = vsel %vm68, %v59, 0
    %v97 = vsel %vm68, %v60, 0
    %v100 = vsel %vm68, %v61, 0
    %v103 = vsel %vm68, %v62, 0
    %v106 = vsel %vm68, %v63, 0
    %v109 = vsel %vm68, %v64, 0
    %v112 = vsel %vm68, %v65, 0
    %v115 = vsel %vm68, %v66, 0
    %v118 = vsel %vm68, %v67, 0
    %120 = vmatpush.xpose.msra.mxu0 %v118
    %121 = vmatpush.xpose.msra.mxu0 %v115
    %122 = vmatpush.xpose.msra.mxu0 %v112
    %123 = vmatpush.xpose.msra.mxu0 %v109
    %124 = vmatpush.xpose.msra.mxu0 %v106
    %125 = vmatpush.xpose.msra.mxu0 %v103
    %126 = vmatpush.xpose.msra.mxu0 %v100
    %127 = vmatpush.xpose.msra.mxu0 %v97
    %128 = vmatpush.xpose.msra.mxu0 %v94
    %129 = vmatpush.xpose.msra.mxu0 %v91
    %130 = vmatpush.xpose.msra.mxu0 %v88
    %131 = vmatpush.xpose.msra.mxu0 %v85
    %132 = vmatpush.xpose.msra.mxu0 %v82
    %133 = vmatpush.xpose.msra.mxu0 %v79
    %134 = vmatpush.xpose.msra.mxu0 %v76
    %135 = vmatpush.xpose.msra.mxu0 %v73
    %136 = vmatmul.f32.gmra.mxu0 %v70
    %v137 = vpop.f32.mrf.mxu0
    %v138 = vadd.f32 0.0, %v137
    %139 = vdwg.mxu0
    %140 = vst [vmem:[#allocation2 + $0x4] sm:$0xf] 0.0
    %s141 = sld [smem:[#allocation6]]
    %v142 = vstv %s141
    %v143 = vadd.f32 %v138, %v142
    %v144 = vadd.f32 %v143, 0.0
    %v145 = vtanh.pop %v144
    %146 = vst [vmem:[#allocation2] sm:$0x1] %v145
    %s147 = sld [smem:[#allocation3 + $0x80]]
    %v148 = vstv %s147
    %v149 = vmul.f32 %v148, %v145
    %v150 = vadd.f32 %v149, 0.0
    %s151 = sld [smem:[#allocation3 + $0x100]]
    %v152 = vstv %s151
    %v153 = vmul.f32 %v152, %v145
    %v154 = vadd.f32 %v153, 0.0
    %s155 = sld [smem:[#allocation3 + $0x180]]
    %v156 = vstv %s155
    %v157 = vmul.f32 %v156, %v145
    %v158 = vadd.f32 %v157, 0.0
    %s159 = sld [smem:[#allocation6 + $0x1]]
    %v160 = vstv %s159
    %v161 = vadd.f32 %v138, %v160
    %v163 = vrot.slane %v150, 7
    %v165 = vadd.f32 %v161, %v163
    %v166 = vtanh.pop %v165
    %167 = vst [vmem:[#allocation2] sm:$0x2] %v166
    %s168 = sld [smem:[#allocation3 + $0x101]]
    %v169 = vstv %s168
    %v170 = vmul.f32 %v169, %v166
    %v172 = vrot.slane %v170, 1
    %v174 = vadd.f32 %v154, %v172
    %s175 = sld [smem:[#allocation3 + $0x181]]
    %v176 = vstv %s175
    %v177 = vmul.f32 %v176, %v166
    %v179 = vrot.slane %v177, 1
    %v181 = vadd.f32 %v158, %v179
    %s182 = sld [smem:[#allocation6 + $0x2]]
    %v183 = vstv %s182
    %v184 = vadd.f32 %v138, %v183
    %v186 = vrot.slane %v174, 6
    %v188 = vadd.f32 %v184, %v186
    %v189 = vtanh.pop %v188
    %190 = vst [vmem:[#allocation2] sm:$0x4] %v189
    %s191 = sld [smem:[#allocation3 + $0x182]]
    %v192 = vstv %s191
    %v193 = vmul.f32 %v192, %v189
    %v195 = vrot.slane %v193, 2
    %v197 = vadd.f32 %v181, %v195
    %s198 = sld [smem:[#allocation6 + $0x3]]
    %v199 = vstv %s198
    %v200 = vadd.f32 %v138, %v199
    %v202 = vrot.slane %v197, 5
    %v204 = vadd.f32 %v200, %v202
    %v205 = vtanh.pop %v204
    %206 = vst [vmem:[#allocation2] sm:$0x8] %v205
    %v207 = vld [vmem:[#allocation2] sm:$0xff]
    %v208 = vmul.f32 %v207, %v207
    %v209 = vsub.f32 1.0, %v208
    %v210 = vld [vmem:[%s3] sm:$0xff]
    %212 = vset.pattern.permute.xlu0 0
    %213 = vperm.xlu0 %212, %v210
    %v214 = vpop.permute.xlu0 %213
    %v216 = vmul.f32 %v209, %v214
    %v217 = vadd.f32 %v216, 1.0
    %v218 = vlaneseq
    %v219 = vshrl.u32 %v218, 7
    %vm220 = vcmp.lt.s32.totalorder %v219, 4
    %v221 = vand.u32 2147483647, %v217
    %v222 = vadd.f32 %v221, 1e-07
    %v223 = vlog2.pop %v222
    %v224 = vmul.f32 %v223, 0.6931472
    %v225 = vsel %vm220, 1, 0
    %vm226 = vcmp.eq.s32.totalorder %v225, 1
    %v227 = vsel %vm226, %v224, 0.0
    %v228 = vrot.slane %v227, 4
    %v229 = vadd.f32 %v227, %v228
    %v230 = vrot.slane %v229, 2
    %v231 = vadd.f32 %v229, %v230
    %v232 = vrot.slane %v231, 1
    %v233 = vadd.f32 %v231, %v232
    %234 = vst [vmem:[#allocation8] sm:$0x1] %v233
    %v235 = vld [vmem:[%s2] sm:$0xff]
    %236 = vxpose.xlu0.b32.start [1/16] %v207, 128
    %237 = vxpose.xlu0.b32.cont [2/16] 0.0, 128
    %238 = vxpose.xlu0.b32.cont [3/16] 0.0, 128
    %239 = vxpose.xlu0.b32.cont [4/16] 0.0, 128
    %240 = vxpose.xlu0.b32.cont [5/16] 0.0, 128
    %241 = vxpose.xlu0.b32.cont [6/16] 0.0, 128
    %242 = vxpose.xlu0.b32.cont [7/16] 0.0, 128
    %243 = vxpose.xlu0.b32.cont [8/16] 0.0, 128
    %244 = vxpose.xlu0.b32.cont [9/16] 0.0, 128
    %245 = vxpose.xlu0.b32.cont [10/16] 0.0, 128
    %246 = vxpose.xlu0.b32.cont [11/16] 0.0, 128
    %247 = vxpose.xlu0.b32.cont [12/16] 0.0, 128
    %248 = vxpose.xlu0.b32.cont [13/16] 0.0, 128
    %249 = vxpose.xlu0.b32.cont [14/16] 0.0, 128
    %250 = vxpose.xlu0.b32.cont [15/16] 0.0, 128
    %251 = vxpose.xlu0.b32.end [16/16] 0.0, 128
    %v252 = vpop.trf.xlu0
    %v253 = vpop.trf.xlu0
    %v254 = vpop.trf.xlu0
    %v255 = vpop.trf.xlu0
    %v256 = vpop.trf.xlu0
    %v257 = vpop.trf.xlu0
    %v258 = vpop.trf.xlu0
    %v259 = vpop.trf.xlu0
    %v260 = vpop.trf.xlu0
    %v261 = vpop.trf.xlu0
    %v262 = vpop.trf.xlu0
    %v263 = vpop.trf.xlu0
    %v264 = vpop.trf.xlu0
    %v265 = vpop.trf.xlu0
    %v266 = vpop.trf.xlu0
    %v267 = vpop.trf.xlu0
    %vm268 = vcmask 64512
    %v270 = vsel %vm268, %v252, 0
    %v273 = vsel %vm268, %v253, 0
    %v276 = vsel %vm268, %v254, 0
    %v279 = vsel %vm268, %v255, 0
    %v282 = vsel %vm268, %v256, 0
    %v285 = vsel %vm268, %v257, 0
    %v288 = vsel %vm268, %v258, 0
    %v291 = vsel %vm268, %v259, 0
    %v294 = vsel %vm268, %v260, 0
    %v297 = vsel %vm268, %v261, 0
    %v300 = vsel %vm268, %v262, 0
    %v303 = vsel %vm268, %v263, 0
    %v306 = vsel %vm268, %v264, 0
    %v309 = vsel %vm268, %v265, 0
    %v312 = vsel %vm268, %v266, 0
    %v315 = vsel %vm268, %v267, 0
    %317 = vmatpush.msra.mxu0 0.0
    %318 = vmatpush.msra.mxu0 0.0
    %319 = vmatpush.msra.mxu0 0.0
    %320 = vmatpush.msra.mxu0 0.0
    %321 = vmatpush.msra.mxu0 0.0
    %322 = vmatpush.msra.mxu0 0.0
    %323 = vmatpush.msra.mxu0 0.0
    %324 = vmatpush.msra.mxu0 0.0
    %325 = vmatpush.msra.mxu0 0.0
    %326 = vmatpush.msra.mxu0 0.0
    %327 = vmatpush.msra.mxu0 0.0
    %328 = vmatpush.msra.mxu0 0.0
    %329 = vmatpush.msra.mxu0 0.0
    %330 = vmatpush.msra.mxu0 0.0
    %331 = vmatpush.msra.mxu0 0.0
    %332 = vmatpush.msra.mxu0 %v235
    %333 = vmatmul.f32.gmra.mxu0 %v270
    %v334 = vpop.f32.mrf.mxu0
    %v335 = vadd.f32 0.0, %v334
    %336 = vmatmul.f32.gmra.mxu0 %v273
    %v337 = vpop.f32.mrf.mxu0
    %v338 = vadd.f32 0.0, %v337
    %339 = vmatmul.f32.gmra.mxu0 %v276
    %v340 = vpop.f32.mrf.mxu0
    %v341 = vadd.f32 0.0, %v340
    %342 = vmatmul.f32.gmra.mxu0 %v279
    %v343 = vpop.f32.mrf.mxu0
    %v344 = vadd.f32 0.0, %v343
    %345 = vmatmul.f32.gmra.mxu0 %v282
    %v346 = vpop.f32.mrf.mxu0
    %v347 = vadd.f32 0.0, %v346
    %348 = vmatmul.f32.gmra.mxu0 %v285
    %v349 = vpop.f32.mrf.mxu0
    %v350 = vadd.f32 0.0, %v349
    %351 = vmatmul.f32.gmra.mxu0 %v288
    %v352 = vpop.f32.mrf.mxu0
    %v353 = vadd.f32 0.0, %v352
    %354 = vmatmul.f32.gmra.mxu0 %v291
    %v355 = vpop.f32.mrf.mxu0
    %v356 = vadd.f32 0.0, %v355
    %357 = vmatmul.f32.gmra.mxu0 %v294
    %v358 = vpop.f32.mrf.mxu0
    %v359 = vadd.f32 0.0, %v358
    %360 = vmatmul.f32.gmra.mxu0 %v297
    %v361 = vpop.f32.mrf.mxu0
    %v362 = vadd.f32 0.0, %v361
    %363 = vmatmul.f32.gmra.mxu0 %v300
    %v364 = vpop.f32.mrf.mxu0
    %v365 = vadd.f32 0.0, %v364
    %366 = vmatmul.f32.gmra.mxu0 %v303
    %v367 = vpop.f32.mrf.mxu0
    %v368 = vadd.f32 0.0, %v367
    %369 = vmatmul.f32.gmra.mxu0 %v306
    %v370 = vpop.f32.mrf.mxu0
    %v371 = vadd.f32 0.0, %v370
    %372 = vmatmul.f32.gmra.mxu0 %v309
    %v373 = vpop.f32.mrf.mxu0
    %v374 = vadd.f32 0.0, %v373
    %375 = vmatmul.f32.gmra.mxu0 %v312
    %v376 = vpop.f32.mrf.mxu0
    %v377 = vadd.f32 0.0, %v376
    %378 = vmatmul.f32.gmra.mxu0 %v315
    %v379 = vpop.f32.mrf.mxu0
    %v380 = vadd.f32 0.0, %v379
    %381 = vdwg.mxu0
    %v382 = vld [vmem:[%s0] sm:$0xff]
    %v383 = vld [vmem:[%s0 + $0x8] sm:$0xff]
    %v384 = vld [vmem:[%s0 + $0x10] sm:$0xff]
    %v385 = vld [vmem:[%s0 + $0x18] sm:$0xff]
    %v386 = vld [vmem:[%s0 + $0x20] sm:$0xff]
    %v387 = vld [vmem:[%s0 + $0x28] sm:$0xff]
    %v388 = vld [vmem:[%s0 + $0x30] sm:$0xff]
    %v389 = vld [vmem:[%s0 + $0x38] sm:$0xff]
    %v390 = vld [vmem:[%s0 + $0x40] sm:$0xff]
    %v391 = vld [vmem:[%s0 + $0x48] sm:$0xff]
    %v392 = vld [vmem:[%s0 + $0x50] sm:$0xff]
    %v393 = vld [vmem:[%s0 + $0x58] sm:$0xff]
    %v394 = vld [vmem:[%s0 + $0x60] sm:$0xff]
    %v395 = vld [vmem:[%s0 + $0x68] sm:$0xff]
    %v396 = vld [vmem:[%s0 + $0x70] sm:$0xff]
    %v397 = vld [vmem:[%s0 + $0x78] sm:$0xff]
    %v398 = vadd.f32 %v382, %v335
    %v399 = vadd.f32 %v383, %v338
    %v400 = vadd.f32 %v384, %v341
    %v401 = vadd.f32 %v385, %v344
    %v402 = vadd.f32 %v386, %v347
    %v403 = vadd.f32 %v387, %v350
    %v404 = vadd.f32 %v388, %v353
    %v405 = vadd.f32 %v389, %v356
    %v406 = vadd.f32 %v390, %v359
    %v407 = vadd.f32 %v391, %v362
    %v408 = vadd.f32 %v392, %v365
    %v409 = vadd.f32 %v393, %v368
    %v410 = vadd.f32 %v394, %v371
    %v411 = vadd.f32 %v395, %v374
    %v412 = vadd.f32 %v396, %v377
    %v413 = vadd.f32 %v397, %v380
    %414 = vst.msk [vmem:[%s6] sm:$0xff] %vm68, %v398
    %415 = vst.msk [vmem:[%s6 + $0x8] sm:$0xff] %vm68, %v399
    %416 = vst.msk [vmem:[%s6 + $0x10] sm:$0xff] %vm68, %v400
    %417 = vst.msk [vmem:[%s6 + $0x18] sm:$0xff] %vm68, %v401
    %418 = vst.msk [vmem:[%s6 + $0x20] sm:$0xff] %vm68, %v402
    %419 = vst.msk [vmem:[%s6 + $0x28] sm:$0xff] %vm68, %v403
    %420 = vst.msk [vmem:[%s6 + $0x30] sm:$0xff] %vm68, %v404
    %421 = vst.msk [vmem:[%s6 + $0x38] sm:$0xff] %vm68, %v405
    %422 = vst.msk [vmem:[%s6 + $0x40] sm:$0xff] %vm68, %v406
    %423 = vst.msk [vmem:[%s6 + $0x48] sm:$0xff] %vm68, %v407
    %424 = vst.msk [vmem:[%s6 + $0x50] sm:$0xff] %vm68, %v408
    %425 = vst.msk [vmem:[%s6 + $0x58] sm:$0xff] %vm68, %v409
    %426 = vst.msk [vmem:[%s6 + $0x60] sm:$0xff] %vm68, %v410
    %427 = vst.msk [vmem:[%s6 + $0x68] sm:$0xff] %vm68, %v411
    %428 = vst.msk [vmem:[%s6 + $0x70] sm:$0xff] %vm68, %v412
    %429 = vst.msk [vmem:[%s6 + $0x78] sm:$0xff] %vm68, %v413
    // Predicated region
    $region34: #{tpu_custom_call.1} parent=1 // pred_check
      _
    $region35: #{tpu_custom_call.1} parent=1 // pred_check_branch
      %431 = sbr.rel (0) target = $region37
    $region36: #{tpu_custom_call.1} parent=1 // pred_region
      _
    $region37: #{tpu_custom_call.1} parent=1 // pred_fallthru
      _
    // Predicated region
    $region38: #{tpu_custom_call.1} parent=1 // pred_check
      _
    $region39: #{tpu_custom_call.1} parent=1 // pred_check_branch
      %433 = sbr.rel (0) target = $region41
    $region40: #{tpu_custom_call.1} parent=1 // pred_region
      %435 = vsyncadd [#allocation4], 0
      %s437 = sshll.u32 [#allocation8], 4
      %s438 = int_to_ptr.vmem [resolvable:$true] %s437
      %s439 = sshll.u32 %s7, 4
      %s440 = int_to_ptr.hbm [resolvable:$true] %s439
      %442 = dma.vmem_to_hbm [thread:$0]  %s438, 16, %s440, [#allocation4]
    $region41: #{tpu_custom_call.1} parent=1 // pred_fallthru
      _
    // Predicated region
    $region42: #{tpu_custom_call.1} parent=1 // pred_check
      _
    $region43: #{tpu_custom_call.1} parent=1 // pred_check_branch
      %444 = sbr.rel (0) target = $region45
    $region44: #{tpu_custom_call.1} parent=1 // pred_region
      _
    $region45: #{tpu_custom_call.1} parent=1 // pred_fallthru
      _
    // Predicated region
    $region46: #{tpu_custom_call.1} parent=1 // pred_check
      _
    $region47: #{tpu_custom_call.1} parent=1 // pred_check_branch
      %446 = sbr.rel (0) target = $region49
    $region48: #{tpu_custom_call.1} parent=1 // pred_region
      %448 = dma.done [#allocation4], 16
    $region49: #{tpu_custom_call.1} parent=1 // pred_fallthru
      _
    %449 = vsyncpa [#allocation4], 1
    %450 = vsyncpa [#allocation5], 1
    %451 = vsyncpa [#allocation7], 1

</llo_original>
